<compile_context>
chip_gen: v5e
topology: v5e:2x2
jax: 0.10.0
libtpu: 0.0.40
codegen_flags: <defaults>
</compile_context>

<pallas_src>
import numpy as np
import jax
import jax.numpy as jnp
from jax.experimental import pallas as pl
from jax.experimental.pallas import tpu as pltpu

# ---- config (mirrors the PyTorch module's config) ----
BATCH = 2
OUT_CHANNELS = 4          # C
POOL_SIZE = 4             # P
WINDOW_SIZE = 3           # K
LENGTH_HIS = 16           # L
EMB_DIM = 32              # E
NEW_SEQ_LEN = LENGTH_HIS - WINDOW_SIZE + 1   # S = 14
NEG_SLOPE = 0.01          # nn.LeakyReLU default

TB = 8                    # batch tile: fills all 8 sublanes of every vreg


def _leaky(x):
    return jnp.where(x >= 0, x, NEG_SLOPE * x)


# ---------------------------------------------------------------------------
# Pallas kernel: whole forward fused, all-VPU (no MXU — both contractions are
# too shallow to be worth a systolic push at these sizes).
#   Linear (C unrolled FMAs) + LeakyReLU
#   + [Upsample ∘ ConvTranspose2d as one precomputed matrix] (C*P unrolled FMAs)
#   + bias + LeakyReLU
# ---------------------------------------------------------------------------
def decoder_kernel(x_ref, w1_ref, b1_ref, w2_ref, b2_ref, out_ref):
    # x   : (TB, C)        VMEM
    # w1  : (C, C*P)       VMEM   Linear weight, transposed
    # b1  : (1, C*P)       VMEM   Linear bias
    # w2  : (C*P, L*E)     VMEM   fused  kron(I_C, U) @ Toeplitz(ConvTranspose2d weight)
    # b2  : (1, L*E)       VMEM   ConvTranspose2d bias, pre-broadcast to a lane-dense row
    # out : (TB, L*E)      VMEM
    x = x_ref[...]                                   # (TB, C)
    w1 = w1_ref[...]                                 # (C, C*P)
    tb = out_ref.shape[0]
    C = x.shape[1]
    CP = w1.shape[1]

    # Layer 1 on the VPU: C broadcast multiply-accumulates.
    h = jnp.broadcast_to(b1_ref[...], (tb, CP))                  # (TB, C*P)
    for k in range(C):                               # C == 4, fully unrolled at trace time
        h = h + x[:, k:k + 1] * w1[k:k + 1, :]
    h = _leaky(h)                                    # LeakyReLU

    # Fused Upsample + ConvTranspose2d: (TB, C*P) @ (C*P, L*E) as C*P exact-f32
    # VPU broadcast-FMAs over 4 output vregs (MXU would be >87% zero-padding here).
    w2 = w2_ref[...]                                 # (C*P, L*E)
    acc = jnp.broadcast_to(b2_ref[...], (tb, w2.shape[1]))       # (TB, L*E), init = bias
    for k in range(CP):                              # C*P == 16, fully unrolled
        acc = acc + h[:, k:k + 1] * w2[k:k + 1, :]
    out_ref[...] = _leaky(acc)                       # LeakyReLU


# ---------------------------------------------------------------------------
# One-time host-side parameter preparation (hoisted out of the forward path)
# ---------------------------------------------------------------------------
def _build_upsample_matrix(P, S):
    """U[p, s] = PyTorch linear-interp weight (align_corners=False), shape (P, S)."""
    scale = S / P                          # nn.Upsample scale_factor
    U = np.zeros((P, S), dtype=np.float32)
    for s in range(S):
        src = (s + 0.5) / scale - 0.5
        src = max(src, 0.0)
        i0 = min(int(np.floor(src)), P - 1)
        i1 = min(i0 + 1, P - 1)
        lam = src - i0
        U[i0, s] += (1.0 - lam)
        U[i1, s] += lam
    return U


def _build_conv_transpose_matrix(w2, C, S, K, E, L):
    """Wc[c*S + s, l*E + e] = w2[c, 0, l-s, e] if 0 <= l-s < K else 0."""
    Wc = np.zeros((C * S, L * E), dtype=np.float32)
    for c in range(C):
        for s in range(S):
            for kh in range(K):
                l = s + kh
                Wc[c * S + s, l * E:(l + 1) * E] = w2[c, 0, kh, :]
    return Wc


def build_decoder_params(w1, b1, w2, b2):
    """Precompute kernel operands once per parameter set (no per-call numpy work)."""
    C, P, K, E, L, S = OUT_CHANNELS, POOL_SIZE, WINDOW_SIZE, EMB_DIM, LENGTH_HIS, NEW_SEQ_LEN

    U = _build_upsample_matrix(P, S)                                  # (P, S)
    Uk = np.kron(np.eye(C, dtype=np.float32), U)                      # (C*P, C*S)
    Wc = _build_conv_transpose_matrix(np.asarray(w2, np.float32), C, S, K, E, L)
    W2 = (Uk @ Wc).astype(np.float32)                                 # fused (C*P, L*E)

    w1_k = jnp.asarray(np.asarray(w1, np.float32).T)                  # (C, C*P)
    b1_k = jnp.asarray(np.asarray(b1, np.float32).reshape(1, C * P))  # (1, C*P)
    b2_row = jnp.full((1, L * E), float(np.asarray(b2).reshape(())), jnp.float32)
    return w1_k, b1_k, jnp.asarray(W2), b2_row


# ---------------------------------------------------------------------------
# Jitted forward: batch padded to a multiple of 8 sublanes, a parallel grid over
# batch chunks (engages both v7x TensorCores when the batch is large), everything
# resident in VMEM (footprint ≈ 70 KiB — no tiling needed on any generation).
# ---------------------------------------------------------------------------
def _decoder_pallas_call(x_pad, w1_k, b1_k, w2_k, b2_row):
    Bp = x_pad.shape[0]
    C, P, L, E = OUT_CHANNELS, POOL_SIZE, LENGTH_HIS, EMB_DIM
    return pl.pallas_call(
        decoder_kernel,
        out_shape=jax.ShapeDtypeStruct((Bp, L * E), jnp.float32),
        grid=(Bp // TB,),
        in_specs=[
            pl.BlockSpec((TB, C), lambda i: (i, 0)),          # x, tiled over batch
            pl.BlockSpec((C, C * P), lambda i: (0, 0)),       # w1 (resident)
            pl.BlockSpec((1, C * P), lambda i: (0, 0)),       # b1 (resident)
            pl.BlockSpec((C * P, L * E), lambda i: (0, 0)),   # W2 (resident)
            pl.BlockSpec((1, L * E), lambda i: (0, 0)),       # b2 row (resident)
        ],
        out_specs=pl.BlockSpec((TB, L * E), lambda i: (i, 0)),
        compiler_params=pltpu.CompilerParams(
            dimension_semantics=("parallel",)),
    )(x_pad, w1_k, b1_k, w2_k, b2_row)


@jax.jit
def _decoder_forward_jit(x, w1_k, b1_k, w2_k, b2_row):
    B = x.shape[0]
    Bp = ((B + TB - 1) // TB) * TB                # pad batch to fill all 8 sublanes
    x_pad = jnp.zeros((Bp, x.shape[1]), jnp.float32).at[:B].set(x)
    out_flat = _decoder_pallas_call(x_pad, w1_k, b1_k, w2_k, b2_row)
    return out_flat[:B].reshape(B, LENGTH_HIS, EMB_DIM)


def cnn_decoder_forward(x, params):
    w1_k, b1_k, w2_k, b2_row = params
    return _decoder_forward_jit(jnp.asarray(x, jnp.float32), w1_k, b1_k, w2_k, b2_row)


# ---------------------------------------------------------------------------
# Pure-numpy reference (independent loops) for a correctness check
# ---------------------------------------------------------------------------
def reference_forward(x, w1, b1, w2, b2):
    C, P, K, E, L, S = OUT_CHANNELS, POOL_SIZE, WINDOW_SIZE, EMB_DIM, LENGTH_HIS, NEW_SEQ_LEN
    x = np.asarray(x, np.float64)
    w1 = np.asarray(w1, np.float64)
    b1 = np.asarray(b1, np.float64)
    w2 = np.asarray(w2, np.float64)
    b2 = float(np.asarray(b2).reshape(()))

    h = x @ w1.T + b1
    h = np.where(h >= 0, h, NEG_SLOPE * h)
    h = h.reshape(-1, C, P)
    B = h.shape[0]

    scale = S / P
    up = np.zeros((B, C, S), dtype=np.float64)
    for s in range(S):
        src = max((s + 0.5) / scale - 0.5, 0.0)
        i0 = min(int(np.floor(src)), P - 1)
        i1 = min(i0 + 1, P - 1)
        lam = src - i0
        up[:, :, s] = (1.0 - lam) * h[:, :, i0] + lam * h[:, :, i1]

    out = np.full((B, L, E), b2, dtype=np.float64)
    for c in range(C):
        for i in range(S):
            for kh in range(K):
                out[:, i + kh, :] += up[:, c, i:i + 1] * w2[c, 0, kh, :][None, :]
    return np.where(out >= 0, out, NEG_SLOPE * out)


if __name__ == "__main__":
    key = jax.random.PRNGKey(0)
    k_x, k_w1, k_b1, k_w2, k_b2 = jax.random.split(key, 5)

    C, P, K, E = OUT_CHANNELS, POOL_SIZE, WINDOW_SIZE, EMB_DIM

    # Deterministic synthetic parameters (shapes follow the PyTorch module __init__)
    x = jax.random.normal(k_x, (BATCH, C), dtype=jnp.float32)
    w1 = jax.random.normal(k_w1, (C * P, C), dtype=jnp.float32) * 0.2   # Linear.weight (out, in)
    b1 = jax.random.normal(k_b1, (C * P,), dtype=jnp.float32) * 0.1     # Linear.bias
    w2 = jax.random.normal(k_w2, (C, 1, K, E), dtype=jnp.float32) * 0.2 # ConvTranspose2d.weight
    b2 = jax.random.normal(k_b2, (1,), dtype=jnp.float32) * 0.1         # ConvTranspose2d.bias

    # One-time parameter prep (hoisted out of the forward path), then the fused forward.
    params = build_decoder_params(w1, b1, w2, b2)
    out = cnn_decoder_forward(x, params)
    out = jax.block_until_ready(out)

    ref = reference_forward(np.asarray(x), np.asarray(w1), np.asarray(b1),
                            np.asarray(w2), np.asarray(b2))

    assert out.shape == (BATCH, LENGTH_HIS, EMB_DIM), out.shape
    np.testing.assert_allclose(np.asarray(out), ref, rtol=1e-3, atol=1e-3)

    print("KERNEL_OK")
</pallas_src>

<mosaic_0001>
module attributes {stable_mosaic.version = 11 : i64} {
  func.func @decoder_kernel(%arg0: i32, %arg1: memref<8x4xf32, #tpu.memory_space<vmem>>, %arg2: memref<4x16xf32, #tpu.memory_space<vmem>>, %arg3: memref<1x16xf32, #tpu.memory_space<vmem>>, %arg4: memref<16x512xf32, #tpu.memory_space<vmem>>, %arg5: memref<1x512xf32, #tpu.memory_space<vmem>>, %arg6: memref<8x512xf32, #tpu.memory_space<vmem>>) attributes {dimension_semantics = [#tpu.dimension_semantics<parallel>], iteration_bounds = array<i64: 1>, scalar_prefetch = 0 : i64, scratch_operands = 0 : i64, tpu.core_type = #tpu.core_type<tc>, window_params = [{transform_indices = @transform_0, window_bounds = array<i64: 8, 4>}, {pipeline_mode = #tpu.pipeline_mode<synchronous>, transform_indices = @transform_1, window_bounds = array<i64: 4, 16>}, {pipeline_mode = #tpu.pipeline_mode<synchronous>, transform_indices = @transform_2, window_bounds = array<i64: 1, 16>}, {pipeline_mode = #tpu.pipeline_mode<synchronous>, transform_indices = @transform_3, window_bounds = array<i64: 16, 512>}, {pipeline_mode = #tpu.pipeline_mode<synchronous>, transform_indices = @transform_4, window_bounds = array<i64: 1, 512>}, {transform_indices = @transform_5, window_bounds = array<i64: 8, 512>}]} {
    %c0 = arith.constant 0 : index
    %c0_0 = arith.constant 0 : index
    %0 = vector.load %arg1[%c0, %c0_0] : memref<8x4xf32, #tpu.memory_space<vmem>>, vector<8x4xf32>
    %c0_1 = arith.constant 0 : index
    %c0_2 = arith.constant 0 : index
    %1 = vector.load %arg2[%c0_1, %c0_2] : memref<4x16xf32, #tpu.memory_space<vmem>>, vector<4x16xf32>
    %c0_3 = arith.constant 0 : index
    %c0_4 = arith.constant 0 : index
    %2 = vector.load %arg3[%c0_3, %c0_4] : memref<1x16xf32, #tpu.memory_space<vmem>>, vector<1x16xf32>
    %3 = vector.shape_cast %2 : vector<1x16xf32> to vector<1x16xf32>
    %4 = vector.broadcast %3 : vector<1x16xf32> to vector<8x16xf32>
    %5 = vector.extract_strided_slice %0 {offsets = [0, 0], sizes = [8, 1], strides = [1, 1]} : vector<8x4xf32> to vector<8x1xf32>
    %6 = vector.extract_strided_slice %1 {offsets = [0, 0], sizes = [1, 16], strides = [1, 1]} : vector<4x16xf32> to vector<1x16xf32>
    %7 = vector.broadcast %5 : vector<8x1xf32> to vector<8x16xf32>
    %8 = vector.broadcast %6 : vector<1x16xf32> to vector<8x16xf32>
    %9 = arith.mulf %7, %8 : vector<8x16xf32>
    %10 = arith.addf %4, %9 : vector<8x16xf32>
    %11 = vector.extract_strided_slice %0 {offsets = [0, 1], sizes = [8, 1], strides = [1, 1]} : vector<8x4xf32> to vector<8x1xf32>
    %12 = vector.extract_strided_slice %1 {offsets = [1, 0], sizes = [1, 16], strides = [1, 1]} : vector<4x16xf32> to vector<1x16xf32>
    %13 = vector.broadcast %11 : vector<8x1xf32> to vector<8x16xf32>
    %14 = vector.broadcast %12 : vector<1x16xf32> to vector<8x16xf32>
    %15 = arith.mulf %13, %14 : vector<8x16xf32>
    %16 = arith.addf %10, %15 : vector<8x16xf32>
    %17 = vector.extract_strided_slice %0 {offsets = [0, 2], sizes = [8, 1], strides = [1, 1]} : vector<8x4xf32> to vector<8x1xf32>
    %18 = vector.extract_strided_slice %1 {offsets = [2, 0], sizes = [1, 16], strides = [1, 1]} : vector<4x16xf32> to vector<1x16xf32>
    %19 = vector.broadcast %17 : vector<8x1xf32> to vector<8x16xf32>
    %20 = vector.broadcast %18 : vector<1x16xf32> to vector<8x16xf32>
    %21 = arith.mulf %19, %20 : vector<8x16xf32>
    %22 = arith.addf %16, %21 : vector<8x16xf32>
    %23 = vector.extract_strided_slice %0 {offsets = [0, 3], sizes = [8, 1], strides = [1, 1]} : vector<8x4xf32> to vector<8x1xf32>
    %24 = vector.extract_strided_slice %1 {offsets = [3, 0], sizes = [1, 16], strides = [1, 1]} : vector<4x16xf32> to vector<1x16xf32>
    %25 = vector.broadcast %23 : vector<8x1xf32> to vector<8x16xf32>
    %26 = vector.broadcast %24 : vector<1x16xf32> to vector<8x16xf32>
    %27 = arith.mulf %25, %26 : vector<8x16xf32>
    %28 = arith.addf %22, %27 : vector<8x16xf32>
    %cst = arith.constant 0.000000e+00 : f32
    %29 = vector.broadcast %cst : f32 to vector<8x16xf32>
    %30 = arith.cmpf oge, %28, %29 : vector<8x16xf32>
    %cst_5 = arith.constant 0.00999999977 : f32
    %31 = vector.broadcast %cst_5 : f32 to vector<8x16xf32>
    %32 = arith.mulf %31, %28 : vector<8x16xf32>
    %33 = arith.select %30, %28, %32 : vector<8x16xi1>, vector<8x16xf32>
    %c0_6 = arith.constant 0 : index
    %c0_7 = arith.constant 0 : index
    %34 = vector.load %arg4[%c0_6, %c0_7] : memref<16x512xf32, #tpu.memory_space<vmem>>, vector<16x512xf32>
    %c0_8 = arith.constant 0 : index
    %c0_9 = arith.constant 0 : index
    %35 = vector.load %arg5[%c0_8, %c0_9] : memref<1x512xf32, #tpu.memory_space<vmem>>, vector<1x512xf32>
    %36 = vector.shape_cast %35 : vector<1x512xf32> to vector<1x512xf32>
    %37 = vector.broadcast %36 : vector<1x512xf32> to vector<8x512xf32>
    %38 = vector.extract_strided_slice %33 {offsets = [0, 0], sizes = [8, 1], strides = [1, 1]} : vector<8x16xf32> to vector<8x1xf32>
    %39 = vector.extract_strided_slice %34 {offsets = [0, 0], sizes = [1, 512], strides = [1, 1]} : vector<16x512xf32> to vector<1x512xf32>
    %40 = vector.broadcast %38 : vector<8x1xf32> to vector<8x512xf32>
    %41 = vector.broadcast %39 : vector<1x512xf32> to vector<8x512xf32>
    %42 = arith.mulf %40, %41 : vector<8x512xf32>
    %43 = arith.addf %37, %42 : vector<8x512xf32>
    %44 = vector.extract_strided_slice %33 {offsets = [0, 1], sizes = [8, 1], strides = [1, 1]} : vector<8x16xf32> to vector<8x1xf32>
    %45 = vector.extract_strided_slice %34 {offsets = [1, 0], sizes = [1, 512], strides = [1, 1]} : vector<16x512xf32> to vector<1x512xf32>
    %46 = vector.broadcast %44 : vector<8x1xf32> to vector<8x512xf32>
    %47 = vector.broadcast %45 : vector<1x512xf32> to vector<8x512xf32>
    %48 = arith.mulf %46, %47 : vector<8x512xf32>
    %49 = arith.addf %43, %48 : vector<8x512xf32>
    %50 = vector.extract_strided_slice %33 {offsets = [0, 2], sizes = [8, 1], strides = [1, 1]} : vector<8x16xf32> to vector<8x1xf32>
    %51 = vector.extract_strided_slice %34 {offsets = [2, 0], sizes = [1, 512], strides = [1, 1]} : vector<16x512xf32> to vector<1x512xf32>
    %52 = vector.broadcast %50 : vector<8x1xf32> to vector<8x512xf32>
    %53 = vector.broadcast %51 : vector<1x512xf32> to vector<8x512xf32>
    %54 = arith.mulf %52, %53 : vector<8x512xf32>
    %55 = arith.addf %49, %54 : vector<8x512xf32>
    %56 = vector.extract_strided_slice %33 {offsets = [0, 3], sizes = [8, 1], strides = [1, 1]} : vector<8x16xf32> to vector<8x1xf32>
    %57 = vector.extract_strided_slice %34 {offsets = [3, 0], sizes = [1, 512], strides = [1, 1]} : vector<16x512xf32> to vector<1x512xf32>
    %58 = vector.broadcast %56 : vector<8x1xf32> to vector<8x512xf32>
    %59 = vector.broadcast %57 : vector<1x512xf32> to vector<8x512xf32>
    %60 = arith.mulf %58, %59 : vector<8x512xf32>
    %61 = arith.addf %55, %60 : vector<8x512xf32>
    %62 = vector.extract_strided_slice %33 {offsets = [0, 4], sizes = [8, 1], strides = [1, 1]} : vector<8x16xf32> to vector<8x1xf32>
    %63 = vector.extract_strided_slice %34 {offsets = [4, 0], sizes = [1, 512], strides = [1, 1]} : vector<16x512xf32> to vector<1x512xf32>
    %64 = vector.broadcast %62 : vector<8x1xf32> to vector<8x512xf32>
    %65 = vector.broadcast %63 : vector<1x512xf32> to vector<8x512xf32>
    %66 = arith.mulf %64, %65 : vector<8x512xf32>
    %67 = arith.addf %61, %66 : vector<8x512xf32>
    %68 = vector.extract_strided_slice %33 {offsets = [0, 5], sizes = [8, 1], strides = [1, 1]} : vector<8x16xf32> to vector<8x1xf32>
    %69 = vector.extract_strided_slice %34 {offsets = [5, 0], sizes = [1, 512], strides = [1, 1]} : vector<16x512xf32> to vector<1x512xf32>
    %70 = vector.broadcast %68 : vector<8x1xf32> to vector<8x512xf32>
    %71 = vector.broadcast %69 : vector<1x512xf32> to vector<8x512xf32>
    %72 = arith.mulf %70, %71 : vector<8x512xf32>
    %73 = arith.addf %67, %72 : vector<8x512xf32>
    %74 = vector.extract_strided_slice %33 {offsets = [0, 6], sizes = [8, 1], strides = [1, 1]} : vector<8x16xf32> to vector<8x1xf32>
    %75 = vector.extract_strided_slice %34 {offsets = [6, 0], sizes = [1, 512], strides = [1, 1]} : vector<16x512xf32> to vector<1x512xf32>
    %76 = vector.broadcast %74 : vector<8x1xf32> to vector<8x512xf32>
    %77 = vector.broadcast %75 : vector<1x512xf32> to vector<8x512xf32>
    %78 = arith.mulf %76, %77 : vector<8x512xf32>
    %79 = arith.addf %73, %78 : vector<8x512xf32>
    %80 = vector.extract_strided_slice %33 {offsets = [0, 7], sizes = [8, 1], strides = [1, 1]} : vector<8x16xf32> to vector<8x1xf32>
    %81 = vector.extract_strided_slice %34 {offsets = [7, 0], sizes = [1, 512], strides = [1, 1]} : vector<16x512xf32> to vector<1x512xf32>
    %82 = vector.broadcast %80 : vector<8x1xf32> to vector<8x512xf32>
    %83 = vector.broadcast %81 : vector<1x512xf32> to vector<8x512xf32>
    %84 = arith.mulf %82, %83 : vector<8x512xf32>
    %85 = arith.addf %79, %84 : vector<8x512xf32>
    %86 = vector.extract_strided_slice %33 {offsets = [0, 8], sizes = [8, 1], strides = [1, 1]} : vector<8x16xf32> to vector<8x1xf32>
    %87 = vector.extract_strided_slice %34 {offsets = [8, 0], sizes = [1, 512], strides = [1, 1]} : vector<16x512xf32> to vector<1x512xf32>
    %88 = vector.broadcast %86 : vector<8x1xf32> to vector<8x512xf32>
    %89 = vector.broadcast %87 : vector<1x512xf32> to vector<8x512xf32>
    %90 = arith.mulf %88, %89 : vector<8x512xf32>
    %91 = arith.addf %85, %90 : vector<8x512xf32>
    %92 = vector.extract_strided_slice %33 {offsets = [0, 9], sizes = [8, 1], strides = [1, 1]} : vector<8x16xf32> to vector<8x1xf32>
    %93 = vector.extract_strided_slice %34 {offsets = [9, 0], sizes = [1, 512], strides = [1, 1]} : vector<16x512xf32> to vector<1x512xf32>
    %94 = vector.broadcast %92 : vector<8x1xf32> to vector<8x512xf32>
    %95 = vector.broadcast %93 : vector<1x512xf32> to vector<8x512xf32>
    %96 = arith.mulf %94, %95 : vector<8x512xf32>
    %97 = arith.addf %91, %96 : vector<8x512xf32>
    %98 = vector.extract_strided_slice %33 {offsets = [0, 10], sizes = [8, 1], strides = [1, 1]} : vector<8x16xf32> to vector<8x1xf32>
    %99 = vector.extract_strided_slice %34 {offsets = [10, 0], sizes = [1, 512], strides = [1, 1]} : vector<16x512xf32> to vector<1x512xf32>
    %100 = vector.broadcast %98 : vector<8x1xf32> to vector<8x512xf32>
    %101 = vector.broadcast %99 : vector<1x512xf32> to vector<8x512xf32>
    %102 = arith.mulf %100, %101 : vector<8x512xf32>
    %103 = arith.addf %97, %102 : vector<8x512xf32>
    %104 = vector.extract_strided_slice %33 {offsets = [0, 11], sizes = [8, 1], strides = [1, 1]} : vector<8x16xf32> to vector<8x1xf32>
    %105 = vector.extract_strided_slice %34 {offsets = [11, 0], sizes = [1, 512], strides = [1, 1]} : vector<16x512xf32> to vector<1x512xf32>
    %106 = vector.broadcast %104 : vector<8x1xf32> to vector<8x512xf32>
    %107 = vector.broadcast %105 : vector<1x512xf32> to vector<8x512xf32>
    %108 = arith.mulf %106, %107 : vector<8x512xf32>
    %109 = arith.addf %103, %108 : vector<8x512xf32>
    %110 = vector.extract_strided_slice %33 {offsets = [0, 12], sizes = [8, 1], strides = [1, 1]} : vector<8x16xf32> to vector<8x1xf32>
    %111 = vector.extract_strided_slice %34 {offsets = [12, 0], sizes = [1, 512], strides = [1, 1]} : vector<16x512xf32> to vector<1x512xf32>
    %112 = vector.broadcast %110 : vector<8x1xf32> to vector<8x512xf32>
    %113 = vector.broadcast %111 : vector<1x512xf32> to vector<8x512xf32>
    %114 = arith.mulf %112, %113 : vector<8x512xf32>
    %115 = arith.addf %109, %114 : vector<8x512xf32>
    %116 = vector.extract_strided_slice %33 {offsets = [0, 13], sizes = [8, 1], strides = [1, 1]} : vector<8x16xf32> to vector<8x1xf32>
    %117 = vector.extract_strided_slice %34 {offsets = [13, 0], sizes = [1, 512], strides = [1, 1]} : vector<16x512xf32> to vector<1x512xf32>
    %118 = vector.broadcast %116 : vector<8x1xf32> to vector<8x512xf32>
    %119 = vector.broadcast %117 : vector<1x512xf32> to vector<8x512xf32>
    %120 = arith.mulf %118, %119 : vector<8x512xf32>
    %121 = arith.addf %115, %120 : vector<8x512xf32>
    %122 = vector.extract_strided_slice %33 {offsets = [0, 14], sizes = [8, 1], strides = [1, 1]} : vector<8x16xf32> to vector<8x1xf32>
    %123 = vector.extract_strided_slice %34 {offsets = [14, 0], sizes = [1, 512], strides = [1, 1]} : vector<16x512xf32> to vector<1x512xf32>
    %124 = vector.broadcast %122 : vector<8x1xf32> to vector<8x512xf32>
    %125 = vector.broadcast %123 : vector<1x512xf32> to vector<8x512xf32>
    %126 = arith.mulf %124, %125 : vector<8x512xf32>
    %127 = arith.addf %121, %126 : vector<8x512xf32>
    %128 = vector.extract_strided_slice %33 {offsets = [0, 15], sizes = [8, 1], strides = [1, 1]} : vector<8x16xf32> to vector<8x1xf32>
    %129 = vector.extract_strided_slice %34 {offsets = [15, 0], sizes = [1, 512], strides = [1, 1]} : vector<16x512xf32> to vector<1x512xf32>
    %130 = vector.broadcast %128 : vector<8x1xf32> to vector<8x512xf32>
    %131 = vector.broadcast %129 : vector<1x512xf32> to vector<8x512xf32>
    %132 = arith.mulf %130, %131 : vector<8x512xf32>
    %133 = arith.addf %127, %132 : vector<8x512xf32>
    %cst_10 = arith.constant 0.000000e+00 : f32
    %134 = vector.broadcast %cst_10 : f32 to vector<8x512xf32>
    %135 = arith.cmpf oge, %133, %134 : vector<8x512xf32>
    %cst_11 = arith.constant 0.00999999977 : f32
    %136 = vector.broadcast %cst_11 : f32 to vector<8x512xf32>
    %137 = arith.mulf %136, %133 : vector<8x512xf32>
    %138 = arith.select %135, %133, %137 : vector<8x512xi1>, vector<8x512xf32>
    %c0_12 = arith.constant 0 : index
    %c0_13 = arith.constant 0 : index
    %139 = vector.load %arg6[%c0_12, %c0_13] : memref<8x512xf32, #tpu.memory_space<vmem>>, vector<8x512xf32>
    tpu.vector_store %arg6[%c0_12, %c0_13], %138 {strides = array<i32>} : memref<8x512xf32, #tpu.memory_space<vmem>>, vector<8x512xf32>,
    return
  }
  func.func @transform_0(%arg0: i32) -> (i32, i32) {
    %c0_i32 = arith.constant 0 : i32
    %c0_i32_0 = arith.constant 0 : i32
    return %arg0, %c0_i32 : i32, i32
  }
  func.func @transform_1(%arg0: i32) -> (i32, i32) {
    %c0_i32 = arith.constant 0 : i32
    %c0_i32_0 = arith.constant 0 : i32
    %c0_i32_1 = arith.constant 0 : i32
    return %c0_i32, %c0_i32_0 : i32, i32
  }
  func.func @transform_2(%arg0: i32) -> (i32, i32) {
    %c0_i32 = arith.constant 0 : i32
    %c0_i32_0 = arith.constant 0 : i32
    %c0_i32_1 = arith.constant 0 : i32
    return %c0_i32, %c0_i32_0 : i32, i32
  }
  func.func @transform_3(%arg0: i32) -> (i32, i32) {
    %c0_i32 = arith.constant 0 : i32
    %c0_i32_0 = arith.constant 0 : i32
    %c0_i32_1 = arith.constant 0 : i32
    return %c0_i32, %c0_i32_0 : i32, i32
  }
  func.func @transform_4(%arg0: i32) -> (i32, i32) {
    %c0_i32 = arith.constant 0 : i32
    %c0_i32_0 = arith.constant 0 : i32
    %c0_i32_1 = arith.constant 0 : i32
    return %c0_i32, %c0_i32_0 : i32, i32
  }
  func.func @transform_5(%arg0: i32) -> (i32, i32) {
    %c0_i32 = arith.constant 0 : i32
    %c0_i32_0 = arith.constant 0 : i32
    return %arg0, %c0_i32 : i32, i32
  }
}

</mosaic_0001>

<llo_original>
// kernel: _decoder_forward_jit.1
$region0: #{_decoder_forward_jit.1}
  #allocation0 [shape = 'u32[]', space=smem, size = 0x4, offset = 0x4, fixed_abs, tag = 'smem constant byte address 0x4 - core index']
  #allocation1 [shape = 'u32[72,128]{1,0:T(1,128)}', space=vmem, size = 0x9000, scoped, tag = 'internal scratch']
  %s0 = inlined_call_operand.vmem [shape: f32[8,4], index: 0, kind: input, shape index: {}]
  %s1 = inlined_call_operand.vmem [shape: f32[4,16], index: 1, kind: input, shape index: {}]
  %s2 = inlined_call_operand.vmem [shape: f32[1,16], index: 2, kind: input, shape index: {}]
  %s3 = inlined_call_operand.hbm [shape: f32[16,512], index: 3, kind: input, shape index: {}]
  %s4 = inlined_call_operand.vmem [shape: f32[1,512], index: 4, kind: input, shape index: {}]
  %s5 = inlined_call_operand.vmem [shape: f32[8,512], index: 5, kind: output, shape index: {}]
  %s6 = sld [smem:[#allocation0]]
  $region34: #{_decoder_forward_jit.1} parent=0
    _
  %s8 = ssub.s32 1, %s6
  %s9 = scalar_select 0, %s8, %s6
  $region1: #{_decoder_forward_jit.1} parent=0
    #allocation2 [shape = 'u8[32768]{0}', space=vmem, size = 0x8000, scoped, tag = 'input window, operand 3, single buffered']
    #allocation3 [shape = 's32[1]{0}', space=sflag, size = 0x4, scoped, tag = 'scoped memory for _decoder_forward_jit.1']
    %10 = vsyncpa [#allocation3], 0
    // Predicated region
    $region2: #{_decoder_forward_jit.1} parent=1 // pred_check
      _
    $region3: #{_decoder_forward_jit.1} parent=1 // pred_check_branch
      %12 = sbr.rel (0) target = $region5
    $region4: #{_decoder_forward_jit.1} parent=1 // pred_region
      _
    $region5: #{_decoder_forward_jit.1} parent=1 // pred_fallthru
      _
    // Predicated region
    $region6: #{_decoder_forward_jit.1} parent=1 // pred_check
      _
    $region7: #{_decoder_forward_jit.1} parent=1 // pred_check_branch
      %14 = sbr.rel (0) target = $region9
    $region8: #{_decoder_forward_jit.1} parent=1 // pred_region
      _
    $region9: #{_decoder_forward_jit.1} parent=1 // pred_fallthru
      _
    // Predicated region
    $region10: #{_decoder_forward_jit.1} parent=1 // pred_check
      _
    $region11: #{_decoder_forward_jit.1} parent=1 // pred_check_branch
      %16 = sbr.rel (0) target = $region13
    $region12: #{_decoder_forward_jit.1} parent=1 // pred_region
      _
    $region13: #{_decoder_forward_jit.1} parent=1 // pred_fallthru
      _
    // Predicated region
    $region14: #{_decoder_forward_jit.1} parent=1 // pred_check
      _
    $region15: #{_decoder_forward_jit.1} parent=1 // pred_check_branch
      %18 = sbr.rel (0) target = $region17
    $region16: #{_decoder_forward_jit.1} parent=1 // pred_region
      %20 = vsyncadd [#allocation3], 0
      %s21 = sshll.u32 %s3, 4
      %s22 = int_to_ptr.hbm [resolvable:$true] %s21
      %s23 = sshll.u32 [#allocation2], 4
      %s24 = int_to_ptr.vmem [resolvable:$true] %s23
      %29 = dma.hbm_to_vmem [thread:$0]  %s22, 1024, %s24, [#allocation3], 512, 512, 32
    $region17: #{_decoder_forward_jit.1} parent=1 // pred_fallthru
      _
    // Predicated region
    $region18: #{_decoder_forward_jit.1} parent=1 // pred_check
      _
    $region19: #{_decoder_forward_jit.1} parent=1 // pred_check_branch
      %31 = sbr.rel (0) target = $region21
    $region20: #{_decoder_forward_jit.1} parent=1 // pred_region
      _
    $region21: #{_decoder_forward_jit.1} parent=1 // pred_fallthru
      _
    // Predicated region
    $region22: #{_decoder_forward_jit.1} parent=1 // pred_check
      _
    $region23: #{_decoder_forward_jit.1} parent=1 // pred_check_branch
      %33 = sbr.rel (0) target = $region25
    $region24: #{_decoder_forward_jit.1} parent=1 // pred_region
      %35 = dma.done [#allocation3], 1024
    $region25: #{_decoder_forward_jit.1} parent=1 // pred_fallthru
      _
    %v36 = vld [vmem:[%s0] sm:$0xff]
    %v37 = vld [vmem:[%s1] sm:$0xf]
    %v38 = vld [vmem:[%s2] sm:$0x1]
    %v40 = vperm.slane %v38, 0
    %43 = vset.pattern.permute.xlu0 0
    %44 = vperm.xlu0 %43, %v36
    %v45 = vpop.permute.xlu0 %44
    %v47 = vperm.slane %v37, 0
    %v48 = vmul.f32 %v45, %v47
    %v49 = vadd.f32 %v40, %v48
    %50 = vset.pattern.permute.xlu0 1
    %51 = vperm.xlu0 %50, %v36
    %v52 = vpop.permute.xlu0 %51
    %v54 = vperm.slane %v37, 1
    %v55 = vmul.f32 %v52, %v54
    %v56 = vadd.f32 %v49, %v55
    %57 = vset.pattern.permute.xlu0 2
    %58 = vperm.xlu0 %57, %v36
    %v59 = vpop.permute.xlu0 %58
    %v61 = vperm.slane %v37, 2
    %v62 = vmul.f32 %v59, %v61
    %v63 = vadd.f32 %v56, %v62
    %64 = vset.pattern.permute.xlu0 3
    %65 = vperm.xlu0 %64, %v36
    %v66 = vpop.permute.xlu0 %65
    %v68 = vperm.slane %v37, 3
    %v69 = vmul.f32 %v66, %v68
    %v70 = vadd.f32 %v63, %v69
    %vm71 = vcmp.ge.f32.partialorder %v70, 0.0
    %v72 = vmul.f32 %v70, 0.01
    %v73 = vsel %vm71, %v70, %v72
    %v74 = vld [vmem:[#allocation2] sm:$0xff]
    %v75 = vld [vmem:[#allocation2 + $0x8] sm:$0xff]
    %v76 = vld [vmem:[#allocation2 + $0x10] sm:$0xff]
    %v77 = vld [vmem:[#allocation2 + $0x18] sm:$0xff]
    %v78 = vld [vmem:[#allocation2 + $0x20] sm:$0xff]
    %v79 = vld [vmem:[#allocation2 + $0x28] sm:$0xff]
    %v80 = vld [vmem:[#allocation2 + $0x30] sm:$0xff]
    %v81 = vld [vmem:[#allocation2 + $0x38] sm:$0xff]
    %v82 = vld [vmem:[%s4] sm:$0xf]
    %v84 = vperm.slane %v82, 0
    %v85 = vperm.slane %v82, 1
    %v86 = vperm.slane %v82, 2
    %v87 = vperm.slane %v82, 3
    %93 = vset.pattern.permute.xlu0 0
    %94 = vperm.xlu0 %93, %v73
    %v95 = vpop.permute.xlu0 %94
    %v97 = vperm.slane %v74, 0
    %v98 = vperm.slane %v75, 0
    %v99 = vperm.slane %v76, 0
    %v100 = vperm.slane %v77, 0
    %v101 = vmul.f32 %v95, %v97
    %v102 = vmul.f32 %v95, %v98
    %v103 = vmul.f32 %v95, %v99
    %v104 = vmul.f32 %v95, %v100
    %v105 = vadd.f32 %v84, %v101
    %v106 = vadd.f32 %v85, %v102
    %v107 = vadd.f32 %v86, %v103
    %v108 = vadd.f32 %v87, %v104
    %109 = vset.pattern.permute.xlu0 1
    %110 = vperm.xlu0 %109, %v73
    %v111 = vpop.permute.xlu0 %110
    %v113 = vperm.slane %v74, 1
    %v114 = vperm.slane %v75, 1
    %v115 = vperm.slane %v76, 1
    %v116 = vperm.slane %v77, 1
    %v117 = vmul.f32 %v111, %v113
    %v118 = vmul.f32 %v111, %v114
    %v119 = vmul.f32 %v111, %v115
    %v120 = vmul.f32 %v111, %v116
    %v121 = vadd.f32 %v105, %v117
    %v122 = vadd.f32 %v106, %v118
    %v123 = vadd.f32 %v107, %v119
    %v124 = vadd.f32 %v108, %v120
    %125 = vset.pattern.permute.xlu0 2
    %126 = vperm.xlu0 %125, %v73
    %v127 = vpop.permute.xlu0 %126
    %v129 = vperm.slane %v74, 2
    %v130 = vperm.slane %v75, 2
    %v131 = vperm.slane %v76, 2
    %v132 = vperm.slane %v77, 2
    %v133 = vmul.f32 %v127, %v129
    %v134 = vmul.f32 %v127, %v130
    %v135 = vmul.f32 %v127, %v131
    %v136 = vmul.f32 %v127, %v132
    %v137 = vadd.f32 %v121, %v133
    %v138 = vadd.f32 %v122, %v134
    %v139 = vadd.f32 %v123, %v135
    %v140 = vadd.f32 %v124, %v136
    %141 = vset.pattern.permute.xlu0 3
    %142 = vperm.xlu0 %141, %v73
    %v143 = vpop.permute.xlu0 %142
    %v145 = vperm.slane %v74, 3
    %v146 = vperm.slane %v75, 3
    %v147 = vperm.slane %v76, 3
    %v148 = vperm.slane %v77, 3
    %v149 = vmul.f32 %v143, %v145
    %v150 = vmul.f32 %v143, %v146
    %v151 = vmul.f32 %v143, %v147
    %v152 = vmul.f32 %v143, %v148
    %v153 = vadd.f32 %v137, %v149
    %v154 = vadd.f32 %v138, %v150
    %v155 = vadd.f32 %v139, %v151
    %v156 = vadd.f32 %v140, %v152
    %157 = vset.pattern.permute.xlu0 4
    %158 = vperm.xlu0 %157, %v73
    %v159 = vpop.permute.xlu0 %158
    %v161 = vperm.slane %v74, 4
    %v162 = vperm.slane %v75, 4
    %v163 = vperm.slane %v76, 4
    %v164 = vperm.slane %v77, 4
    %v165 = vmul.f32 %v159, %v161
    %v166 = vmul.f32 %v159, %v162
    %v167 = vmul.f32 %v159, %v163
    %v168 = vmul.f32 %v159, %v164
    %v169 = vadd.f32 %v153, %v165
    %v170 = vadd.f32 %v154, %v166
    %v171 = vadd.f32 %v155, %v167
    %v172 = vadd.f32 %v156, %v168
    %173 = vset.pattern.permute.xlu0 5
    %174 = vperm.xlu0 %173, %v73
    %v175 = vpop.permute.xlu0 %174
    %v177 = vperm.slane %v74, 5
    %v178 = vperm.slane %v75, 5
    %v179 = vperm.slane %v76, 5
    %v180 = vperm.slane %v77, 5
    %v181 = vmul.f32 %v175, %v177
    %v182 = vmul.f32 %v175, %v178
    %v183 = vmul.f32 %v175, %v179
    %v184 = vmul.f32 %v175, %v180
    %v185 = vadd.f32 %v169, %v181
    %v186 = vadd.f32 %v170, %v182
    %v187 = vadd.f32 %v171, %v183
    %v188 = vadd.f32 %v172, %v184
    %189 = vset.pattern.permute.xlu0 6
    %190 = vperm.xlu0 %189, %v73
    %v191 = vpop.permute.xlu0 %190
    %v193 = vperm.slane %v74, 6
    %v194 = vperm.slane %v75, 6
    %v195 = vperm.slane %v76, 6
    %v196 = vperm.slane %v77, 6
    %v197 = vmul.f32 %v191, %v193
    %v198 = vmul.f32 %v191, %v194
    %v199 = vmul.f32 %v191, %v195
    %v200 = vmul.f32 %v191, %v196
    %v201 = vadd.f32 %v185, %v197
    %v202 = vadd.f32 %v186, %v198
    %v203 = vadd.f32 %v187, %v199
    %v204 = vadd.f32 %v188, %v200
    %205 = vset.pattern.permute.xlu0 7
    %206 = vperm.xlu0 %205, %v73
    %v207 = vpop.permute.xlu0 %206
    %v209 = vperm.slane %v74, 7
    %v210 = vperm.slane %v75, 7
    %v211 = vperm.slane %v76, 7
    %v212 = vperm.slane %v77, 7
    %v213 = vmul.f32 %v207, %v209
    %v214 = vmul.f32 %v207, %v210
    %v215 = vmul.f32 %v207, %v211
    %v216 = vmul.f32 %v207, %v212
    %v217 = vadd.f32 %v201, %v213
    %v218 = vadd.f32 %v202, %v214
    %v219 = vadd.f32 %v203, %v215
    %v220 = vadd.f32 %v204, %v216
    %221 = vset.pattern.permute.xlu0 8
    %222 = vperm.xlu0 %221, %v73
    %v223 = vpop.permute.xlu0 %222
    %v225 = vperm.slane %v78, 0
    %v226 = vperm.slane %v79, 0
    %v227 = vperm.slane %v80, 0
    %v228 = vperm.slane %v81, 0
    %v229 = vmul.f32 %v223, %v225
    %v230 = vmul.f32 %v223, %v226
    %v231 = vmul.f32 %v223, %v227
    %v232 = vmul.f32 %v223, %v228
    %v233 = vadd.f32 %v217, %v229
    %v234 = vadd.f32 %v218, %v230
    %v235 = vadd.f32 %v219, %v231
    %v236 = vadd.f32 %v220, %v232
    %237 = vset.pattern.permute.xlu0 9
    %238 = vperm.xlu0 %237, %v73
    %v239 = vpop.permute.xlu0 %238
    %v241 = vperm.slane %v78, 1
    %v242 = vperm.slane %v79, 1
    %v243 = vperm.slane %v80, 1
    %v244 = vperm.slane %v81, 1
    %v245 = vmul.f32 %v239, %v241
    %v246 = vmul.f32 %v239, %v242
    %v247 = vmul.f32 %v239, %v243
    %v248 = vmul.f32 %v239, %v244
    %v249 = vadd.f32 %v233, %v245
    %v250 = vadd.f32 %v234, %v246
    %v251 = vadd.f32 %v235, %v247
    %v252 = vadd.f32 %v236, %v248
    %253 = vset.pattern.permute.xlu0 10
    %254 = vperm.xlu0 %253, %v73
    %v255 = vpop.permute.xlu0 %254
    %v257 = vperm.slane %v78, 2
    %v258 = vperm.slane %v79, 2
    %v259 = vperm.slane %v80, 2
    %v260 = vperm.slane %v81, 2
    %v261 = vmul.f32 %v255, %v257
    %v262 = vmul.f32 %v255, %v258
    %v263 = vmul.f32 %v255, %v259
    %v264 = vmul.f32 %v255, %v260
    %v265 = vadd.f32 %v249, %v261
    %v266 = vadd.f32 %v250, %v262
    %v267 = vadd.f32 %v251, %v263
    %v268 = vadd.f32 %v252, %v264
    %269 = vset.pattern.permute.xlu0 11
    %270 = vperm.xlu0 %269, %v73
    %v271 = vpop.permute.xlu0 %270
    %v273 = vperm.slane %v78, 3
    %v274 = vperm.slane %v79, 3
    %v275 = vperm.slane %v80, 3
    %v276 = vperm.slane %v81, 3
    %v277 = vmul.f32 %v271, %v273
    %v278 = vmul.f32 %v271, %v274
    %v279 = vmul.f32 %v271, %v275
    %v280 = vmul.f32 %v271, %v276
    %v281 = vadd.f32 %v265, %v277
    %v282 = vadd.f32 %v266, %v278
    %v283 = vadd.f32 %v267, %v279
    %v284 = vadd.f32 %v268, %v280
    %285 = vset.pattern.permute.xlu0 12
    %286 = vperm.xlu0 %285, %v73
    %v287 = vpop.permute.xlu0 %286
    %v289 = vperm.slane %v78, 4
    %v290 = vperm.slane %v79, 4
    %v291 = vperm.slane %v80, 4
    %v292 = vperm.slane %v81, 4
    %v293 = vmul.f32 %v287, %v289
    %v294 = vmul.f32 %v287, %v290
    %v295 = vmul.f32 %v287, %v291
    %v296 = vmul.f32 %v287, %v292
    %v297 = vadd.f32 %v281, %v293
    %v298 = vadd.f32 %v282, %v294
    %v299 = vadd.f32 %v283, %v295
    %v300 = vadd.f32 %v284, %v296
    %301 = vset.pattern.permute.xlu0 13
    %302 = vperm.xlu0 %301, %v73
    %v303 = vpop.permute.xlu0 %302
    %v305 = vperm.slane %v78, 5
    %v306 = vperm.slane %v79, 5
    %v307 = vperm.slane %v80, 5
    %v308 = vperm.slane %v81, 5
    %v309 = vmul.f32 %v303, %v305
    %v310 = vmul.f32 %v303, %v306
    %v311 = vmul.f32 %v303, %v307
    %v312 = vmul.f32 %v303, %v308
    %v313 = vadd.f32 %v297, %v309
    %v314 = vadd.f32 %v298, %v310
    %v315 = vadd.f32 %v299, %v311
    %v316 = vadd.f32 %v300, %v312
    %317 = vset.pattern.permute.xlu0 14
    %318 = vperm.xlu0 %317, %v73
    %v319 = vpop.permute.xlu0 %318
    %v321 = vperm.slane %v78, 6
    %v322 = vperm.slane %v79, 6
    %v323 = vperm.slane %v80, 6
    %v324 = vperm.slane %v81, 6
    %v325 = vmul.f32 %v319, %v321
    %v326 = vmul.f32 %v319, %v322
    %v327 = vmul.f32 %v319, %v323
    %v328 = vmul.f32 %v319, %v324
    %v329 = vadd.f32 %v313, %v325
    %v330 = vadd.f32 %v314, %v326
    %v331 = vadd.f32 %v315, %v327
    %v332 = vadd.f32 %v316, %v328
    %333 = vset.pattern.permute.xlu0 15
    %334 = vperm.xlu0 %333, %v73
    %v335 = vpop.permute.xlu0 %334
    %v337 = vperm.slane %v78, 7
    %v338 = vperm.slane %v79, 7
    %v339 = vperm.slane %v80, 7
    %v340 = vperm.slane %v81, 7
    %v341 = vmul.f32 %v335, %v337
    %v342 = vmul.f32 %v335, %v338
    %v343 = vmul.f32 %v335, %v339
    %v344 = vmul.f32 %v335, %v340
    %v345 = vadd.f32 %v329, %v341
    %v346 = vadd.f32 %v330, %v342
    %v347 = vadd.f32 %v331, %v343
    %v348 = vadd.f32 %v332, %v344
    %vm349 = vcmp.ge.f32.partialorder %v345, 0.0
    %vm350 = vcmp.ge.f32.partialorder %v346, 0.0
    %vm351 = vcmp.ge.f32.partialorder %v347, 0.0
    %vm352 = vcmp.ge.f32.partialorder %v348, 0.0
    %v353 = vmul.f32 %v345, 0.01
    %v354 = vmul.f32 %v346, 0.01
    %v355 = vmul.f32 %v347, 0.01
    %v356 = vmul.f32 %v348, 0.01
    %v357 = vsel %vm349, %v345, %v353
    %v358 = vsel %vm350, %v346, %v354
    %v359 = vsel %vm351, %v347, %v355
    %v360 = vsel %vm352, %v348, %v356
    %361 = vst [vmem:[%s5] sm:$0xff] %v357
    %362 = vst [vmem:[%s5 + $0x8] sm:$0xff] %v358
    %363 = vst [vmem:[%s5 + $0x10] sm:$0xff] %v359
    %364 = vst [vmem:[%s5 + $0x18] sm:$0xff] %v360
    // Predicated region
    $region26: #{_decoder_forward_jit.1} parent=1 // pred_check
      _
    $region27: #{_decoder_forward_jit.1} parent=1 // pred_check_branch
      %366 = sbr.rel (0) target = $region29
    $region28: #{_decoder_forward_jit.1} parent=1 // pred_region
      _
    $region29: #{_decoder_forward_jit.1} parent=1 // pred_fallthru
      _
    // Predicated region
    $region30: #{_decoder_forward_jit.1} parent=1 // pred_check
      _
    $region31: #{_decoder_forward_jit.1} parent=1 // pred_check_branch
      %368 = sbr.rel (0) target = $region33
    $region32: #{_decoder_forward_jit.1} parent=1 // pred_region
      _
    $region33: #{_decoder_forward_jit.1} parent=1 // pred_fallthru
      _
    %369 = vsyncpa [#allocation3], 1

</llo_original>
